<compile_context>
chip_gen: v7x
topology: tpu7x:2x2x1
jax: 0.10.0
libtpu: 0.0.40
codegen_flags: <defaults>
</compile_context>

<pallas_src>
import functools

import jax
import jax.numpy as jnp
from jax.experimental import pallas as pl
from jax.experimental.pallas import tpu as pltpu


_KSIZE, _STRIDE, _PAD = 7, 2, 3          # conv1
_POOL_K, _POOL_S, _POOL_P = 3, 2, 1      # maxpool
_KPAD = 256                              # 7*7*Cin (=147) + bias feature, padded


# ----------------------------- Pallas kernel --------------------------------

def _resnet_fused_kernel(x_ref, w_ref, pool_ref, fcw_ref, fcb_ref, o_ref, *,
                         n_taps, pos):
    """Whole forward pass on one VMEM-resident working set.

    x_ref    : (n_taps*pos, Kpad) bf16  combined conv-im2col / pool-window
               patches; M-index = (pool tap, sample, pooled position).
    w_ref    : (Cout, Kpad)       bf16  conv weights, eval-BN folded, bias as
               an extra K feature (so zero rows -> exactly 0 after ReLU).
    pool_ref : (pos, N)           f32   pooled-position -> per-sample matrix;
               carries the 1/(Hp*Wp) avgpool and the 2**num_blocks residual
               fold.
    fcw_ref  : (Q, Cout) f32, fcb_ref: (Q, 1) f32.
    o_ref    : (Q, N) f32 logits (channel-major; tiny transpose outside).
    """
    # conv1 + BN + bias + ReLU: one MXU GEMM, f32 accumulate.  Contraction on
    # the *last* dim of both operands so no host-side (M,K)->(K,M) transpose.
    y = jax.lax.dot_general(
        w_ref[...], x_ref[...],
        dimension_numbers=(((1,), (1,)), ((), ())),
        preferred_element_type=jnp.float32)                 # (Cout, n_taps*pos)
    y = jnp.maximum(y, 0.0)

    # 3x3/s2 maxpool: 8 elementwise maxes over lane-aligned (Cout, pos) slabs.
    m = y[:, 0:pos]
    for t in range(1, n_taps):
        m = jnp.maximum(m, y[:, t * pos:(t + 1) * pos])

    # residual stage (relu(x+x) k times == x*2**k on non-negative input) and
    # global avgpool, folded into pool_ref -> per-sample features (Cout, N).
    h = jnp.dot(m, pool_ref[...], preferred_element_type=jnp.float32)

    # classifier, emitted (Q, N).
    o_ref[...] = (jnp.dot(fcw_ref[...], h, preferred_element_type=jnp.float32)
                  + fcb_ref[...])


def resnet_fused_call(x_aug, w_aug, pool_mat, fc_w, fc_b_col):
    mprime, kpad = x_aug.shape
    cout = w_aug.shape[0]
    pos, n_batch = pool_mat.shape
    q = fc_w.shape[0]
    n_taps = mprime // pos
    kernel = functools.partial(_resnet_fused_kernel, n_taps=n_taps, pos=pos)
    out_t = pl.pallas_call(
        kernel,
        out_shape=jax.ShapeDtypeStruct((q, n_batch), jnp.float32),
        grid=(1,),
        in_specs=[
            pl.BlockSpec((mprime, kpad), lambda i: (0, 0)),
            pl.BlockSpec((cout, kpad), lambda i: (0, 0)),
            pl.BlockSpec((pos, n_batch), lambda i: (0, 0)),
            pl.BlockSpec((q, cout), lambda i: (0, 0)),
            pl.BlockSpec((q, 1), lambda i: (0, 0)),
        ],
        out_specs=pl.BlockSpec((q, n_batch), lambda i: (0, 0)),
        # Single grid step: after fusion the working set (<1 MiB) is VMEM
        # resident on every generation; extra steps would only add per-step
        # overhead on single-TC v5e/v6e.  See TODO at top for v7x scaling.
        compiler_params=pltpu.CompilerParams(
            dimension_semantics=("arbitrary",)),
    )(x_aug, w_aug, pool_mat, fc_w, fc_b_col)
    return out_t.T


# ------------------------------- JAX glue -----------------------------------

def _build_fused_inputs(x_nchw, params, *, num_blocks_total, eps=1e-5):
    """Pure indexing / weight-folding glue (no materialized big transposes)."""
    n, cin, h, w = x_nchw.shape
    conv_w = params["conv1_w"]                            # (Cout, Cin, 7, 7)
    cout = conv_w.shape[0]
    k0 = _KSIZE * _KSIZE * cin

    # Fold eval-mode BatchNorm into conv weights / bias.
    bn_scale = params["bn1_gamma"] * jax.lax.rsqrt(params["bn1_var"] + eps)
    w_folded = conv_w * bn_scale[:, None, None, None]
    bias = (params["conv1_b"] - params["bn1_mean"]) * bn_scale + params["bn1_beta"]
    # K layout = (kh, kw, cin); bias rides as feature k0; zero-pad K to 256.
    w_k = jnp.transpose(w_folded, (2, 3, 1, 0)).reshape(k0, cout)   # tiny weights
    w_aug = jnp.zeros((cout, _KPAD), jnp.float32)
    w_aug = w_aug.at[:, :k0].set(w_k.T)
    w_aug = w_aug.at[:, k0].set(bias)
    w_aug = w_aug.astype(jnp.bfloat16)

    # conv im2col built directly as (M, K) — stack + contiguous reshape only.
    ho = (h + 2 * _PAD - _KSIZE) // _STRIDE + 1
    wo = (w + 2 * _PAD - _KSIZE) // _STRIDE + 1
    x_nhwc = jnp.transpose(x_nchw, (0, 2, 3, 1))          # raw input only (tiny)
    xp = jnp.pad(x_nhwc, ((0, 0), (_PAD, _PAD), (_PAD, _PAD), (0, 0)))
    taps = [xp[:, kh:kh + _STRIDE * (ho - 1) + 1:_STRIDE,
               kw:kw + _STRIDE * (wo - 1) + 1:_STRIDE, :]
            for kh in range(_KSIZE) for kw in range(_KSIZE)]
    patches = jnp.stack(taps, axis=3).reshape(n, ho, wo, k0)
    patches = jnp.concatenate(
        [patches, jnp.ones((n, ho, wo, 1), patches.dtype)], axis=-1)  # bias/valid

    # Pre-compose the 3x3/s2/p1 maxpool windows with the im2col.  Zero padding
    # is exact: padded rows give 0 post-ReLU (bias feature is 0 there) and the
    # real activation is non-negative.
    pp = jnp.pad(patches, ((0, 0), (_POOL_P, _POOL_P), (_POOL_P, _POOL_P), (0, 0)))
    hp = (ho + 2 * _POOL_P - _POOL_K) // _POOL_S + 1
    wp = (wo + 2 * _POOL_P - _POOL_K) // _POOL_S + 1
    pos_per_n = 64                         # pad hp*wp = 49 -> 64 (aligned halves)
    assert hp * wp <= pos_per_n
    slabs = []
    for dh in range(_POOL_K):
        for dw in range(_POOL_K):
            s = pp[:, dh:dh + _POOL_S * (hp - 1) + 1:_POOL_S,
                   dw:dw + _POOL_S * (wp - 1) + 1:_POOL_S, :]   # (n, hp, wp, k0+1)
            s = s.reshape(n, hp * wp, k0 + 1)
            s = jnp.pad(s, ((0, 0), (0, pos_per_n - hp * wp), (0, 0)))
            slabs.append(s.reshape(n * pos_per_n, k0 + 1))
    x_aug = jnp.stack(slabs, axis=0).reshape(_POOL_K * _POOL_K * n * pos_per_n,
                                             k0 + 1)
    x_aug = jnp.pad(x_aug, ((0, 0), (0, _KPAD - (k0 + 1)))).astype(jnp.bfloat16)

    # Pooled-position -> per-sample matrix: global 7x7 avgpool (1/(hp*wp))
    # merged with the residual-stage fold relu(x+x)^k == x * 2**k.
    scale = float(2 ** num_blocks_total) / float(hp * wp)
    pool_mat = jnp.repeat(jnp.eye(n, dtype=jnp.float32), pos_per_n, axis=0) * scale

    fc_w = params["fc_w"].astype(jnp.float32)             # (Q, Cout)
    fc_b = params["fc_b"].reshape(-1, 1).astype(jnp.float32)
    return x_aug, w_aug, pool_mat, fc_w, fc_b


def resnet_forward(x_nchw, params, *, num_blocks_total, eps=1e-5):
    x_aug, w_aug, pool_mat, fc_w, fc_b = _build_fused_inputs(
        x_nchw, params, num_blocks_total=num_blocks_total, eps=eps)
    return resnet_fused_call(x_aug, w_aug, pool_mat, fc_w, fc_b)


# ------------------------- pure-JAX reference (check) ------------------------

def resnet_reference(x, params, num_blocks_total, eps=1e-5):
    out = jax.lax.conv_general_dilated(
        x, params["conv1_w"], window_strides=(2, 2),
        padding=((3, 3), (3, 3)),
        dimension_numbers=("NCHW", "OIHW", "NCHW"),
        precision=jax.lax.Precision.HIGHEST)
    out = out + params["conv1_b"][None, :, None, None]
    scale = params["bn1_gamma"] / jnp.sqrt(params["bn1_var"] + eps)
    out = ((out - params["bn1_mean"][None, :, None, None])
           * scale[None, :, None, None]
           + params["bn1_beta"][None, :, None, None])
    out = jnp.maximum(out, 0.0)
    out = jax.lax.reduce_window(out, -jnp.inf, jax.lax.max,
                                (1, 1, 3, 3), (1, 1, 2, 2),
                                ((0, 0), (0, 0), (1, 1), (1, 1)))
    for _ in range(num_blocks_total):
        out = jnp.maximum(out + out, 0.0)
    out = jnp.mean(out, axis=(2, 3))
    return out @ params["fc_w"].T + params["fc_b"]


# ---------------------------------- main -------------------------------------

if __name__ == "__main__":
    key = jax.random.PRNGKey(0)
    keys = jax.random.split(key, 8)

    # Model config: in_channels=3, num_classes=10,
    # layers = [ResiduaLayer(BaseResidualBlock, 2, 8, 8, stride=1),
    #           ResiduaLayer(BaseResidualBlock, 2, 8, 8, stride=1)]
    # stride==1 and in_planes==out_planes -> no downsample branch anywhere.
    in_channels, num_classes, planes = 3, 10, 8
    num_blocks_total = 2 + 2
    N, H, W = 2, 28, 28  # 28 -conv1-> 14 -maxpool-> 7 -avgpool(7)-> 1

    x = jax.random.normal(keys[0], (N, in_channels, H, W), jnp.float32)

    params = {
        "conv1_w": 0.1 * jax.random.normal(
            keys[1], (planes, in_channels, 7, 7), jnp.float32),
        "conv1_b": 0.1 * jax.random.normal(keys[2], (planes,), jnp.float32),
        "bn1_gamma": 1.0 + 0.1 * jax.random.normal(keys[3], (planes,), jnp.float32),
        "bn1_beta": 0.1 * jax.random.normal(keys[4], (planes,), jnp.float32),
        "bn1_mean": jnp.zeros((planes,), jnp.float32),
        "bn1_var": jnp.ones((planes,), jnp.float32),
        "fc_w": 0.1 * jax.random.normal(keys[5], (num_classes, planes), jnp.float32),
        "fc_b": 0.1 * jax.random.normal(keys[6], (num_classes,), jnp.float32),
    }

    fwd = jax.jit(functools.partial(resnet_forward,
                                    num_blocks_total=num_blocks_total))
    out = jax.block_until_ready(fwd(x, params))

    ref = resnet_reference(x, params, num_blocks_total)
    assert out.shape == (N, num_classes), out.shape
    assert bool(jnp.all(jnp.isfinite(out)))
    # bf16 MXU operands (weights, patches, folded bias) -> loose tolerance.
    assert bool(jnp.allclose(out, ref, atol=5e-2, rtol=5e-2)), (out, ref)

    print("KERNEL_OK")
</pallas_src>

<mosaic_0001>
module attributes {stable_mosaic.version = 11 : i64} {
  func.func @_resnet_fused_kernel(%arg0: i32, %arg1: memref<1152x256xbf16, #tpu.memory_space<vmem>>, %arg2: memref<8x256xbf16, #tpu.memory_space<vmem>>, %arg3: memref<128x2xf32, #tpu.memory_space<vmem>>, %arg4: memref<10x8xf32, #tpu.memory_space<vmem>>, %arg5: memref<10x1xf32, #tpu.memory_space<vmem>>, %arg6: memref<10x2xf32, #tpu.memory_space<vmem>>) attributes {dimension_semantics = [#tpu.dimension_semantics<arbitrary>], iteration_bounds = array<i64: 1>, scalar_prefetch = 0 : i64, scratch_operands = 0 : i64, tpu.core_type = #tpu.core_type<tc>, window_params = [{pipeline_mode = #tpu.pipeline_mode<synchronous>, transform_indices = @transform_0, window_bounds = array<i64: 1152, 256>}, {pipeline_mode = #tpu.pipeline_mode<synchronous>, transform_indices = @transform_1, window_bounds = array<i64: 8, 256>}, {pipeline_mode = #tpu.pipeline_mode<synchronous>, transform_indices = @transform_2, window_bounds = array<i64: 128, 2>}, {pipeline_mode = #tpu.pipeline_mode<synchronous>, transform_indices = @transform_3, window_bounds = array<i64: 10, 8>}, {pipeline_mode = #tpu.pipeline_mode<synchronous>, transform_indices = @transform_4, window_bounds = array<i64: 10, 1>}, {pipeline_mode = #tpu.pipeline_mode<synchronous>, transform_indices = @transform_5, window_bounds = array<i64: 10, 2>}]} {
    %c0 = arith.constant 0 : index
    %c0_0 = arith.constant 0 : index
    %0 = vector.load %arg2[%c0, %c0_0] : memref<8x256xbf16, #tpu.memory_space<vmem>>, vector<8x256xbf16>
    %c0_1 = arith.constant 0 : index
    %c0_2 = arith.constant 0 : index
    %1 = vector.load %arg1[%c0_1, %c0_2] : memref<1152x256xbf16, #tpu.memory_space<vmem>>, vector<1152x256xbf16>
    %cst = arith.constant dense<0.000000e+00> : vector<8x1152xf32>
    %2 = tpu.matmul %0, %1, %cst {dimension_numbers = #tpu.dot_dimension_numbers<[1], [1], [0], [0], [0, 0, 1, 0], [], []>} : vector<8x256xbf16>, vector<1152x256xbf16>, vector<8x1152xf32> -> vector<8x1152xf32>
    %cst_3 = arith.constant 0.000000e+00 : f32
    %3 = vector.broadcast %cst_3 : f32 to vector<8x1152xf32>
    %4 = arith.maximumf %2, %3 : vector<8x1152xf32>
    %5 = vector.extract_strided_slice %4 {offsets = [0, 0], sizes = [8, 128], strides = [1, 1]} : vector<8x1152xf32> to vector<8x128xf32>
    %6 = vector.extract_strided_slice %4 {offsets = [0, 128], sizes = [8, 128], strides = [1, 1]} : vector<8x1152xf32> to vector<8x128xf32>
    %7 = arith.maximumf %5, %6 : vector<8x128xf32>
    %8 = vector.extract_strided_slice %4 {offsets = [0, 256], sizes = [8, 128], strides = [1, 1]} : vector<8x1152xf32> to vector<8x128xf32>
    %9 = arith.maximumf %7, %8 : vector<8x128xf32>
    %10 = vector.extract_strided_slice %4 {offsets = [0, 384], sizes = [8, 128], strides = [1, 1]} : vector<8x1152xf32> to vector<8x128xf32>
    %11 = arith.maximumf %9, %10 : vector<8x128xf32>
    %12 = vector.extract_strided_slice %4 {offsets = [0, 512], sizes = [8, 128], strides = [1, 1]} : vector<8x1152xf32> to vector<8x128xf32>
    %13 = arith.maximumf %11, %12 : vector<8x128xf32>
    %14 = vector.extract_strided_slice %4 {offsets = [0, 640], sizes = [8, 128], strides = [1, 1]} : vector<8x1152xf32> to vector<8x128xf32>
    %15 = arith.maximumf %13, %14 : vector<8x128xf32>
    %16 = vector.extract_strided_slice %4 {offsets = [0, 768], sizes = [8, 128], strides = [1, 1]} : vector<8x1152xf32> to vector<8x128xf32>
    %17 = arith.maximumf %15, %16 : vector<8x128xf32>
    %18 = vector.extract_strided_slice %4 {offsets = [0, 896], sizes = [8, 128], strides = [1, 1]} : vector<8x1152xf32> to vector<8x128xf32>
    %19 = arith.maximumf %17, %18 : vector<8x128xf32>
    %20 = vector.extract_strided_slice %4 {offsets = [0, 1024], sizes = [8, 128], strides = [1, 1]} : vector<8x1152xf32> to vector<8x128xf32>
    %21 = arith.maximumf %19, %20 : vector<8x128xf32>
    %c0_4 = arith.constant 0 : index
    %c0_5 = arith.constant 0 : index
    %22 = vector.load %arg3[%c0_4, %c0_5] : memref<128x2xf32, #tpu.memory_space<vmem>>, vector<128x2xf32>
    %cst_6 = arith.constant dense<0.000000e+00> : vector<8x2xf32>
    %23 = tpu.matmul %21, %22, %cst_6 {dimension_numbers = #tpu.dot_dimension_numbers<[1], [0], [0], [1], [0, 0, 1, 1], [], []>} : vector<8x128xf32>, vector<128x2xf32>, vector<8x2xf32> -> vector<8x2xf32>
    %c0_7 = arith.constant 0 : index
    %c0_8 = arith.constant 0 : index
    %24 = vector.load %arg4[%c0_7, %c0_8] : memref<10x8xf32, #tpu.memory_space<vmem>>, vector<10x8xf32>
    %cst_9 = arith.constant dense<0.000000e+00> : vector<10x2xf32>
    %25 = tpu.matmul %24, %23, %cst_9 {dimension_numbers = #tpu.dot_dimension_numbers<[1], [0], [0], [1], [0, 0, 1, 1], [], []>} : vector<10x8xf32>, vector<8x2xf32>, vector<10x2xf32> -> vector<10x2xf32>
    %c0_10 = arith.constant 0 : index
    %c0_11 = arith.constant 0 : index
    %26 = vector.load %arg5[%c0_10, %c0_11] : memref<10x1xf32, #tpu.memory_space<vmem>>, vector<10x1xf32>
    %27 = vector.broadcast %26 : vector<10x1xf32> to vector<10x2xf32>
    %28 = arith.addf %25, %27 : vector<10x2xf32>
    %c0_12 = arith.constant 0 : index
    %c0_13 = arith.constant 0 : index
    %29 = vector.load %arg6[%c0_12, %c0_13] : memref<10x2xf32, #tpu.memory_space<vmem>>, vector<10x2xf32>
    tpu.vector_store %arg6[%c0_12, %c0_13], %28 {strides = array<i32>} : memref<10x2xf32, #tpu.memory_space<vmem>>, vector<10x2xf32>,
    return
  }
  func.func @transform_0(%arg0: i32) -> (i32, i32) {
    %c0_i32 = arith.constant 0 : i32
    %c0_i32_0 = arith.constant 0 : i32
    %c0_i32_1 = arith.constant 0 : i32
    return %c0_i32, %c0_i32_0 : i32, i32
  }
  func.func @transform_1(%arg0: i32) -> (i32, i32) {
    %c0_i32 = arith.constant 0 : i32
    %c0_i32_0 = arith.constant 0 : i32
    %c0_i32_1 = arith.constant 0 : i32
    return %c0_i32, %c0_i32_0 : i32, i32
  }
  func.func @transform_2(%arg0: i32) -> (i32, i32) {
    %c0_i32 = arith.constant 0 : i32
    %c0_i32_0 = arith.constant 0 : i32
    %c0_i32_1 = arith.constant 0 : i32
    return %c0_i32, %c0_i32_0 : i32, i32
  }
  func.func @transform_3(%arg0: i32) -> (i32, i32) {
    %c0_i32 = arith.constant 0 : i32
    %c0_i32_0 = arith.constant 0 : i32
    %c0_i32_1 = arith.constant 0 : i32
    return %c0_i32, %c0_i32_0 : i32, i32
  }
  func.func @transform_4(%arg0: i32) -> (i32, i32) {
    %c0_i32 = arith.constant 0 : i32
    %c0_i32_0 = arith.constant 0 : i32
    %c0_i32_1 = arith.constant 0 : i32
    return %c0_i32, %c0_i32_0 : i32, i32
  }
  func.func @transform_5(%arg0: i32) -> (i32, i32) {
    %c0_i32 = arith.constant 0 : i32
    %c0_i32_0 = arith.constant 0 : i32
    %c0_i32_1 = arith.constant 0 : i32
    return %c0_i32, %c0_i32_0 : i32, i32
  }
}

</mosaic_0001>

<llo_original>
// kernel: resnet_forward.1
$region0: #{resnet_forward.1}
  #allocation0 [shape = 'u32[]', space=smem, size = 0x4, offset = 0x4, fixed_abs, tag = 'smem constant byte address 0x4 - core index']
  #allocation1 [shape = 'u32[144,128]{1,0:T(1,128)}', space=vmem, size = 0x12000, scoped, tag = 'internal scratch']
  %s0 = inlined_call_operand.vmem [shape: bf16[1152,256], index: 0, kind: input, shape index: {}]
  %s1 = inlined_call_operand.vmem [shape: bf16[8,256], index: 1, kind: input, shape index: {}]
  %s2 = inlined_call_operand.vmem [shape: f32[128,2], index: 2, kind: input, shape index: {}]
  %s3 = inlined_call_operand.vmem [shape: f32[10,8], index: 3, kind: input, shape index: {}]
  %s4 = inlined_call_operand.vmem [shape: f32[10,1], index: 4, kind: input, shape index: {}]
  %s5 = inlined_call_operand.vmem [shape: f32[10,2], index: 5, kind: output, shape index: {}]
  %s6 = sld [smem:[#allocation0]]
  $region30: #{resnet_forward.1} parent=0
    _
  %s8 = ssub.s32 1, %s6
  %s9 = scalar_select 0, %s8, %s6
  // Predicated region
  $region2: #{resnet_forward.1} parent=0 // pred_check
    _
  $region3: #{resnet_forward.1} parent=0 // pred_check_branch
    %11 = sbr.rel (0) target = $region5
  $region4: #{resnet_forward.1} parent=0 // pred_region
    _
  $region5: #{resnet_forward.1} parent=0 // pred_fallthru
    _
  // Predicated region
  $region6: #{resnet_forward.1} parent=0 // pred_check
    _
  $region7: #{resnet_forward.1} parent=0 // pred_check_branch
    %13 = sbr.rel (0) target = $region9
  $region8: #{resnet_forward.1} parent=0 // pred_region
    _
  $region9: #{resnet_forward.1} parent=0 // pred_fallthru
    _
  // Predicated region
  $region10: #{resnet_forward.1} parent=0 // pred_check
    _
  $region11: #{resnet_forward.1} parent=0 // pred_check_branch
    %15 = sbr.rel (0) target = $region13
  $region12: #{resnet_forward.1} parent=0 // pred_region
    _
  $region13: #{resnet_forward.1} parent=0 // pred_fallthru
    _
  // Predicated region
  $region14: #{resnet_forward.1} parent=0 // pred_check
    _
  $region15: #{resnet_forward.1} parent=0 // pred_check_branch
    %17 = sbr.rel (0) target = $region17
  $region16: #{resnet_forward.1} parent=0 // pred_region
    _
  $region17: #{resnet_forward.1} parent=0 // pred_fallthru
    _
  // Predicated region
  $region18: #{resnet_forward.1} parent=0 // pred_check
    _
  $region19: #{resnet_forward.1} parent=0 // pred_check_branch
    %19 = sbr.rel (0) target = $region21
  $region20: #{resnet_forward.1} parent=0 // pred_region
    _
  $region21: #{resnet_forward.1} parent=0 // pred_fallthru
    _
  %v21 = vld [vmem:[%s1] sm:$0xff]
  %v22 = vld [vmem:[%s0] sm:$0xff]
  %v23 = vld [vmem:[%s0 + $0x8] sm:$0xff]
  %v24 = vld [vmem:[%s0 + $0x10] sm:$0xff]
  %v25 = vld [vmem:[%s0 + $0x18] sm:$0xff]
  %v26 = vld [vmem:[%s0 + $0x20] sm:$0xff]
  %v27 = vld [vmem:[%s0 + $0x28] sm:$0xff]
  %v28 = vld [vmem:[%s0 + $0x30] sm:$0xff]
  %v29 = vld [vmem:[%s0 + $0x38] sm:$0xff]
  %v30 = vld [vmem:[%s0 + $0x40] sm:$0xff]
  %v31 = vld [vmem:[%s0 + $0x48] sm:$0xff]
  %v32 = vld [vmem:[%s0 + $0x50] sm:$0xff]
  %v33 = vld [vmem:[%s0 + $0x58] sm:$0xff]
  %v34 = vld [vmem:[%s0 + $0x60] sm:$0xff]
  %v35 = vld [vmem:[%s0 + $0x68] sm:$0xff]
  %v36 = vld [vmem:[%s0 + $0x70] sm:$0xff]
  %v37 = vld [vmem:[%s0 + $0x78] sm:$0xff]
  %v38 = vld [vmem:[%s0 + $0x80] sm:$0xff]
  %v39 = vld [vmem:[%s0 + $0x88] sm:$0xff]
  %v40 = vld [vmem:[%s0 + $0x90] sm:$0xff]
  %v41 = vld [vmem:[%s0 + $0x98] sm:$0xff]
  %v42 = vld [vmem:[%s0 + $0xa0] sm:$0xff]
  %v43 = vld [vmem:[%s0 + $0xa8] sm:$0xff]
  %v44 = vld [vmem:[%s0 + $0xb0] sm:$0xff]
  %v45 = vld [vmem:[%s0 + $0xb8] sm:$0xff]
  %v46 = vld [vmem:[%s0 + $0xc0] sm:$0xff]
  %v47 = vld [vmem:[%s0 + $0xc8] sm:$0xff]
  %v48 = vld [vmem:[%s0 + $0xd0] sm:$0xff]
  %v49 = vld [vmem:[%s0 + $0xd8] sm:$0xff]
  %v50 = vld [vmem:[%s0 + $0xe0] sm:$0xff]
  %v51 = vld [vmem:[%s0 + $0xe8] sm:$0xff]
  %v52 = vld [vmem:[%s0 + $0xf0] sm:$0xff]
  %v53 = vld [vmem:[%s0 + $0xf8] sm:$0xff]
  %v54 = vld [vmem:[%s0 + $0x100] sm:$0xff]
  %v55 = vld [vmem:[%s0 + $0x108] sm:$0xff]
  %v56 = vld [vmem:[%s0 + $0x110] sm:$0xff]
  %v57 = vld [vmem:[%s0 + $0x118] sm:$0xff]
  %v58 = vld [vmem:[%s0 + $0x120] sm:$0xff]
  %v59 = vld [vmem:[%s0 + $0x128] sm:$0xff]
  %v60 = vld [vmem:[%s0 + $0x130] sm:$0xff]
  %v61 = vld [vmem:[%s0 + $0x138] sm:$0xff]
  %v62 = vld [vmem:[%s0 + $0x140] sm:$0xff]
  %v63 = vld [vmem:[%s0 + $0x148] sm:$0xff]
  %v64 = vld [vmem:[%s0 + $0x150] sm:$0xff]
  %v65 = vld [vmem:[%s0 + $0x158] sm:$0xff]
  %v66 = vld [vmem:[%s0 + $0x160] sm:$0xff]
  %v67 = vld [vmem:[%s0 + $0x168] sm:$0xff]
  %v68 = vld [vmem:[%s0 + $0x170] sm:$0xff]
  %v69 = vld [vmem:[%s0 + $0x178] sm:$0xff]
  %v70 = vld [vmem:[%s0 + $0x180] sm:$0xff]
  %v71 = vld [vmem:[%s0 + $0x188] sm:$0xff]
  %v72 = vld [vmem:[%s0 + $0x190] sm:$0xff]
  %v73 = vld [vmem:[%s0 + $0x198] sm:$0xff]
  %v74 = vld [vmem:[%s0 + $0x1a0] sm:$0xff]
  %v75 = vld [vmem:[%s0 + $0x1a8] sm:$0xff]
  %v76 = vld [vmem:[%s0 + $0x1b0] sm:$0xff]
  %v77 = vld [vmem:[%s0 + $0x1b8] sm:$0xff]
  %v78 = vld [vmem:[%s0 + $0x1c0] sm:$0xff]
  %v79 = vld [vmem:[%s0 + $0x1c8] sm:$0xff]
  %v80 = vld [vmem:[%s0 + $0x1d0] sm:$0xff]
  %v81 = vld [vmem:[%s0 + $0x1d8] sm:$0xff]
  %v82 = vld [vmem:[%s0 + $0x1e0] sm:$0xff]
  %v83 = vld [vmem:[%s0 + $0x1e8] sm:$0xff]
  %v84 = vld [vmem:[%s0 + $0x1f0] sm:$0xff]
  %v85 = vld [vmem:[%s0 + $0x1f8] sm:$0xff]
  %v86 = vld [vmem:[%s0 + $0x200] sm:$0xff]
  %v87 = vld [vmem:[%s0 + $0x208] sm:$0xff]
  %v88 = vld [vmem:[%s0 + $0x210] sm:$0xff]
  %v89 = vld [vmem:[%s0 + $0x218] sm:$0xff]
  %v90 = vld [vmem:[%s0 + $0x220] sm:$0xff]
  %v91 = vld [vmem:[%s0 + $0x228] sm:$0xff]
  %v92 = vld [vmem:[%s0 + $0x230] sm:$0xff]
  %v93 = vld [vmem:[%s0 + $0x238] sm:$0xff]
  %v94 = vld [vmem:[%s0 + $0x240] sm:$0xff]
  %v95 = vld [vmem:[%s0 + $0x248] sm:$0xff]
  %v96 = vld [vmem:[%s0 + $0x250] sm:$0xff]
  %v97 = vld [vmem:[%s0 + $0x258] sm:$0xff]
  %v98 = vld [vmem:[%s0 + $0x260] sm:$0xff]
  %v99 = vld [vmem:[%s0 + $0x268] sm:$0xff]
  %v100 = vld [vmem:[%s0 + $0x270] sm:$0xff]
  %v101 = vld [vmem:[%s0 + $0x278] sm:$0xff]
  %v102 = vld [vmem:[%s0 + $0x280] sm:$0xff]
  %v103 = vld [vmem:[%s0 + $0x288] sm:$0xff]
  %v104 = vld [vmem:[%s0 + $0x290] sm:$0xff]
  %v105 = vld [vmem:[%s0 + $0x298] sm:$0xff]
  %v106 = vld [vmem:[%s0 + $0x2a0] sm:$0xff]
  %v107 = vld [vmem:[%s0 + $0x2a8] sm:$0xff]
  %v108 = vld [vmem:[%s0 + $0x2b0] sm:$0xff]
  %v109 = vld [vmem:[%s0 + $0x2b8] sm:$0xff]
  %v110 = vld [vmem:[%s0 + $0x2c0] sm:$0xff]
  %v111 = vld [vmem:[%s0 + $0x2c8] sm:$0xff]
  %v112 = vld [vmem:[%s0 + $0x2d0] sm:$0xff]
  %v113 = vld [vmem:[%s0 + $0x2d8] sm:$0xff]
  %v114 = vld [vmem:[%s0 + $0x2e0] sm:$0xff]
  %v115 = vld [vmem:[%s0 + $0x2e8] sm:$0xff]
  %v116 = vld [vmem:[%s0 + $0x2f0] sm:$0xff]
  %v117 = vld [vmem:[%s0 + $0x2f8] sm:$0xff]
  %v118 = vld [vmem:[%s0 + $0x300] sm:$0xff]
  %v119 = vld [vmem:[%s0 + $0x308] sm:$0xff]
  %v120 = vld [vmem:[%s0 + $0x310] sm:$0xff]
  %v121 = vld [vmem:[%s0 + $0x318] sm:$0xff]
  %v122 = vld [vmem:[%s0 + $0x320] sm:$0xff]
  %v123 = vld [vmem:[%s0 + $0x328] sm:$0xff]
  %v124 = vld [vmem:[%s0 + $0x330] sm:$0xff]
  %v125 = vld [vmem:[%s0 + $0x338] sm:$0xff]
  %v126 = vld [vmem:[%s0 + $0x340] sm:$0xff]
  %v127 = vld [vmem:[%s0 + $0x348] sm:$0xff]
  %v128 = vld [vmem:[%s0 + $0x350] sm:$0xff]
  %v129 = vld [vmem:[%s0 + $0x358] sm:$0xff]
  %v130 = vld [vmem:[%s0 + $0x360] sm:$0xff]
  %v131 = vld [vmem:[%s0 + $0x368] sm:$0xff]
  %v132 = vld [vmem:[%s0 + $0x370] sm:$0xff]
  %v133 = vld [vmem:[%s0 + $0x378] sm:$0xff]
  %v134 = vld [vmem:[%s0 + $0x380] sm:$0xff]
  %v135 = vld [vmem:[%s0 + $0x388] sm:$0xff]
  %v136 = vld [vmem:[%s0 + $0x390] sm:$0xff]
  %v137 = vld [vmem:[%s0 + $0x398] sm:$0xff]
  %v138 = vld [vmem:[%s0 + $0x3a0] sm:$0xff]
  %v139 = vld [vmem:[%s0 + $0x3a8] sm:$0xff]
  %v140 = vld [vmem:[%s0 + $0x3b0] sm:$0xff]
  %v141 = vld [vmem:[%s0 + $0x3b8] sm:$0xff]
  %v142 = vld [vmem:[%s0 + $0x3c0] sm:$0xff]
  %v143 = vld [vmem:[%s0 + $0x3c8] sm:$0xff]
  %v144 = vld [vmem:[%s0 + $0x3d0] sm:$0xff]
  %v145 = vld [vmem:[%s0 + $0x3d8] sm:$0xff]
  %v146 = vld [vmem:[%s0 + $0x3e0] sm:$0xff]
  %v147 = vld [vmem:[%s0 + $0x3e8] sm:$0xff]
  %v148 = vld [vmem:[%s0 + $0x3f0] sm:$0xff]
  %v149 = vld [vmem:[%s0 + $0x3f8] sm:$0xff]
  %v150 = vld [vmem:[%s0 + $0x400] sm:$0xff]
  %v151 = vld [vmem:[%s0 + $0x408] sm:$0xff]
  %v152 = vld [vmem:[%s0 + $0x410] sm:$0xff]
  %v153 = vld [vmem:[%s0 + $0x418] sm:$0xff]
  %v154 = vld [vmem:[%s0 + $0x420] sm:$0xff]
  %v155 = vld [vmem:[%s0 + $0x428] sm:$0xff]
  %v156 = vld [vmem:[%s0 + $0x430] sm:$0xff]
  %v157 = vld [vmem:[%s0 + $0x438] sm:$0xff]
  %v158 = vld [vmem:[%s0 + $0x440] sm:$0xff]
  %v159 = vld [vmem:[%s0 + $0x448] sm:$0xff]
  %v160 = vld [vmem:[%s0 + $0x450] sm:$0xff]
  %v161 = vld [vmem:[%s0 + $0x458] sm:$0xff]
  %v162 = vld [vmem:[%s0 + $0x460] sm:$0xff]
  %v163 = vld [vmem:[%s0 + $0x468] sm:$0xff]
  %v164 = vld [vmem:[%s0 + $0x470] sm:$0xff]
  %v165 = vld [vmem:[%s0 + $0x478] sm:$0xff]
  %v167 = vunpack.c.l.b16 %v21
  %v168 = vunpack.c.h.b16 %v21
  %v169 = vpack.c.b16 %v167, %v167
  %v170 = vpack.c.b16 %v168, %v168
  %v317 = vunpack.c.l.b16 %v22
  %v318 = vunpack.c.h.b16 %v22
  %v319 = vunpack.c.l.b16 %v23
  %v320 = vunpack.c.h.b16 %v23
  %v321 = vunpack.c.l.b16 %v24
  %v322 = vunpack.c.h.b16 %v24
  %v323 = vunpack.c.l.b16 %v25
  %v324 = vunpack.c.h.b16 %v25
  %v325 = vunpack.c.l.b16 %v26
  %v326 = vunpack.c.h.b16 %v26
  %v327 = vunpack.c.l.b16 %v27
  %v328 = vunpack.c.h.b16 %v27
  %v329 = vunpack.c.l.b16 %v28
  %v330 = vunpack.c.h.b16 %v28
  %v331 = vunpack.c.l.b16 %v29
  %v332 = vunpack.c.h.b16 %v29
  %v333 = vunpack.c.l.b16 %v30
  %v334 = vunpack.c.h.b16 %v30
  %v335 = vunpack.c.l.b16 %v31
  %v336 = vunpack.c.h.b16 %v31
  %v337 = vunpack.c.l.b16 %v32
  %v338 = vunpack.c.h.b16 %v32
  %v339 = vunpack.c.l.b16 %v33
  %v340 = vunpack.c.h.b16 %v33
  %v341 = vunpack.c.l.b16 %v34
  %v342 = vunpack.c.h.b16 %v34
  %v343 = vunpack.c.l.b16 %v35
  %v344 = vunpack.c.h.b16 %v35
  %v345 = vunpack.c.l.b16 %v36
  %v346 = vunpack.c.h.b16 %v36
  %v347 = vunpack.c.l.b16 %v37
  %v348 = vunpack.c.h.b16 %v37
  %v349 = vunpack.c.l.b16 %v38
  %v350 = vunpack.c.h.b16 %v38
  %v351 = vunpack.c.l.b16 %v39
  %v352 = vunpack.c.h.b16 %v39
  %v353 = vunpack.c.l.b16 %v40
  %v354 = vunpack.c.h.b16 %v40
  %v355 = vunpack.c.l.b16 %v41
  %v356 = vunpack.c.h.b16 %v41
  %v357 = vunpack.c.l.b16 %v42
  %v358 = vunpack.c.h.b16 %v42
  %v359 = vunpack.c.l.b16 %v43
  %v360 = vunpack.c.h.b16 %v43
  %v361 = vunpack.c.l.b16 %v44
  %v362 = vunpack.c.h.b16 %v44
  %v363 = vunpack.c.l.b16 %v45
  %v364 = vunpack.c.h.b16 %v45
  %v365 = vunpack.c.l.b16 %v46
  %v366 = vunpack.c.h.b16 %v46
  %v367 = vunpack.c.l.b16 %v47
  %v368 = vunpack.c.h.b16 %v47
  %v369 = vunpack.c.l.b16 %v48
  %v370 = vunpack.c.h.b16 %v48
  %v371 = vunpack.c.l.b16 %v49
  %v372 = vunpack.c.h.b16 %v49
  %v373 = vunpack.c.l.b16 %v50
  %v374 = vunpack.c.h.b16 %v50
  %v375 = vunpack.c.l.b16 %v51
  %v376 = vunpack.c.h.b16 %v51
  %v377 = vunpack.c.l.b16 %v52
  %v378 = vunpack.c.h.b16 %v52
  %v379 = vunpack.c.l.b16 %v53
  %v380 = vunpack.c.h.b16 %v53
  %v381 = vunpack.c.l.b16 %v54
  %v382 = vunpack.c.h.b16 %v54
  %v383 = vunpack.c.l.b16 %v55
  %v384 = vunpack.c.h.b16 %v55
  %v385 = vunpack.c.l.b16 %v56
  %v386 = vunpack.c.h.b16 %v56
  %v387 = vunpack.c.l.b16 %v57
  %v388 = vunpack.c.h.b16 %v57
  %v389 = vunpack.c.l.b16 %v58
  %v390 = vunpack.c.h.b16 %v58
  %v391 = vunpack.c.l.b16 %v59
  %v392 = vunpack.c.h.b16 %v59
  %v393 = vunpack.c.l.b16 %v60
  %v394 = vunpack.c.h.b16 %v60
  %v395 = vunpack.c.l.b16 %v61
  %v396 = vunpack.c.h.b16 %v61
  %v397 = vunpack.c.l.b16 %v62
  %v398 = vunpack.c.h.b16 %v62
  %v399 = vunpack.c.l.b16 %v63
  %v400 = vunpack.c.h.b16 %v63
  %v401 = vunpack.c.l.b16 %v64
  %v402 = vunpack.c.h.b16 %v64
  %v403 = vunpack.c.l.b16 %v65
  %v404 = vunpack.c.h.b16 %v65
  %v405 = vunpack.c.l.b16 %v66
  %v406 = vunpack.c.h.b16 %v66
  %v407 = vunpack.c.l.b16 %v67
  %v408 = vunpack.c.h.b16 %v67
  %v409 = vunpack.c.l.b16 %v68
  %v410 = vunpack.c.h.b16 %v68
  %v411 = vunpack.c.l.b16 %v69
  %v412 = vunpack.c.h.b16 %v69
  %v413 = vunpack.c.l.b16 %v70
  %v414 = vunpack.c.h.b16 %v70
  %v415 = vunpack.c.l.b16 %v71
  %v416 = vunpack.c.h.b16 %v71
  %v417 = vunpack.c.l.b16 %v72
  %v418 = vunpack.c.h.b16 %v72
  %v419 = vunpack.c.l.b16 %v73
  %v420 = vunpack.c.h.b16 %v73
  %v421 = vunpack.c.l.b16 %v74
  %v422 = vunpack.c.h.b16 %v74
  %v423 = vunpack.c.l.b16 %v75
  %v424 = vunpack.c.h.b16 %v75
  %v425 = vunpack.c.l.b16 %v76
  %v426 = vunpack.c.h.b16 %v76
  %v427 = vunpack.c.l.b16 %v77
  %v428 = vunpack.c.h.b16 %v77
  %v429 = vunpack.c.l.b16 %v78
  %v430 = vunpack.c.h.b16 %v78
  %v431 = vunpack.c.l.b16 %v79
  %v432 = vunpack.c.h.b16 %v79
  %v433 = vunpack.c.l.b16 %v80
  %v434 = vunpack.c.h.b16 %v80
  %v435 = vunpack.c.l.b16 %v81
  %v436 = vunpack.c.h.b16 %v81
  %v437 = vunpack.c.l.b16 %v82
  %v438 = vunpack.c.h.b16 %v82
  %v439 = vunpack.c.l.b16 %v83
  %v440 = vunpack.c.h.b16 %v83
  %v441 = vunpack.c.l.b16 %v84
  %v442 = vunpack.c.h.b16 %v84
  %v443 = vunpack.c.l.b16 %v85
  %v444 = vunpack.c.h.b16 %v85
  %v445 = vunpack.c.l.b16 %v86
  %v446 = vunpack.c.h.b16 %v86
  %v447 = vunpack.c.l.b16 %v87
  %v448 = vunpack.c.h.b16 %v87
  %v449 = vunpack.c.l.b16 %v88
  %v450 = vunpack.c.h.b16 %v88
  %v451 = vunpack.c.l.b16 %v89
  %v452 = vunpack.c.h.b16 %v89
  %v453 = vunpack.c.l.b16 %v90
  %v454 = vunpack.c.h.b16 %v90
  %v455 = vunpack.c.l.b16 %v91
  %v456 = vunpack.c.h.b16 %v91
  %v457 = vunpack.c.l.b16 %v92
  %v458 = vunpack.c.h.b16 %v92
  %v459 = vunpack.c.l.b16 %v93
  %v460 = vunpack.c.h.b16 %v93
  %v461 = vunpack.c.l.b16 %v94
  %v462 = vunpack.c.h.b16 %v94
  %v463 = vunpack.c.l.b16 %v95
  %v464 = vunpack.c.h.b16 %v95
  %v465 = vunpack.c.l.b16 %v96
  %v466 = vunpack.c.h.b16 %v96
  %v467 = vunpack.c.l.b16 %v97
  %v468 = vunpack.c.h.b16 %v97
  %v469 = vunpack.c.l.b16 %v98
  %v470 = vunpack.c.h.b16 %v98
  %v471 = vunpack.c.l.b16 %v99
  %v472 = vunpack.c.h.b16 %v99
  %v473 = vunpack.c.l.b16 %v100
  %v474 = vunpack.c.h.b16 %v100
  %v475 = vunpack.c.l.b16 %v101
  %v476 = vunpack.c.h.b16 %v101
  %v477 = vunpack.c.l.b16 %v102
  %v478 = vunpack.c.h.b16 %v102
  %v479 = vunpack.c.l.b16 %v103
  %v480 = vunpack.c.h.b16 %v103
  %v481 = vunpack.c.l.b16 %v104
  %v482 = vunpack.c.h.b16 %v104
  %v483 = vunpack.c.l.b16 %v105
  %v484 = vunpack.c.h.b16 %v105
  %v485 = vunpack.c.l.b16 %v106
  %v486 = vunpack.c.h.b16 %v106
  %v487 = vunpack.c.l.b16 %v107
  %v488 = vunpack.c.h.b16 %v107
  %v489 = vunpack.c.l.b16 %v108
  %v490 = vunpack.c.h.b16 %v108
  %v491 = vunpack.c.l.b16 %v109
  %v492 = vunpack.c.h.b16 %v109
  %v493 = vunpack.c.l.b16 %v110
  %v494 = vunpack.c.h.b16 %v110
  %v495 = vunpack.c.l.b16 %v111
  %v496 = vunpack.c.h.b16 %v111
  %v497 = vunpack.c.l.b16 %v112
  %v498 = vunpack.c.h.b16 %v112
  %v499 = vunpack.c.l.b16 %v113
  %v500 = vunpack.c.h.b16 %v113
  %v501 = vunpack.c.l.b16 %v114
  %v502 = vunpack.c.h.b16 %v114
  %v503 = vunpack.c.l.b16 %v115
  %v504 = vunpack.c.h.b16 %v115
  %v505 = vunpack.c.l.b16 %v116
  %v506 = vunpack.c.h.b16 %v116
  %v507 = vunpack.c.l.b16 %v117
  %v508 = vunpack.c.h.b16 %v117
  %v509 = vunpack.c.l.b16 %v118
  %v510 = vunpack.c.h.b16 %v118
  %v511 = vunpack.c.l.b16 %v119
  %v512 = vunpack.c.h.b16 %v119
  %v513 = vunpack.c.l.b16 %v120
  %v514 = vunpack.c.h.b16 %v120
  %v515 = vunpack.c.l.b16 %v121
  %v516 = vunpack.c.h.b16 %v121
  %v517 = vunpack.c.l.b16 %v122
  %v518 = vunpack.c.h.b16 %v122
  %v519 = vunpack.c.l.b16 %v123
  %v520 = vunpack.c.h.b16 %v123
  %v521 = vunpack.c.l.b16 %v124
  %v522 = vunpack.c.h.b16 %v124
  %v523 = vunpack.c.l.b16 %v125
  %v524 = vunpack.c.h.b16 %v125
  %v525 = vunpack.c.l.b16 %v126
  %v526 = vunpack.c.h.b16 %v126
  %v527 = vunpack.c.l.b16 %v127
  %v528 = vunpack.c.h.b16 %v127
  %v529 = vunpack.c.l.b16 %v128
  %v530 = vunpack.c.h.b16 %v128
  %v531 = vunpack.c.l.b16 %v129
  %v532 = vunpack.c.h.b16 %v129
  %v533 = vunpack.c.l.b16 %v130
  %v534 = vunpack.c.h.b16 %v130
  %v535 = vunpack.c.l.b16 %v131
  %v536 = vunpack.c.h.b16 %v131
  %v537 = vunpack.c.l.b16 %v132
  %v538 = vunpack.c.h.b16 %v132
  %v539 = vunpack.c.l.b16 %v133
  %v540 = vunpack.c.h.b16 %v133
  %v541 = vunpack.c.l.b16 %v134
  %v542 = vunpack.c.h.b16 %v134
  %v543 = vunpack.c.l.b16 %v135
  %v544 = vunpack.c.h.b16 %v135
  %v545 = vunpack.c.l.b16 %v136
  %v546 = vunpack.c.h.b16 %v136
  %v547 = vunpack.c.l.b16 %v137
  %v548 = vunpack.c.h.b16 %v137
  %v549 = vunpack.c.l.b16 %v138
  %v550 = vunpack.c.h.b16 %v138
  %v551 = vunpack.c.l.b16 %v139
  %v552 = vunpack.c.h.b16 %v139
  %v553 = vunpack.c.l.b16 %v140
  %v554 = vunpack.c.h.b16 %v140
  %v555 = vunpack.c.l.b16 %v141
  %v556 = vunpack.c.h.b16 %v141
  %v557 = vunpack.c.l.b16 %v142
  %v558 = vunpack.c.h.b16 %v142
  %v559 = vunpack.c.l.b16 %v143
  %v560 = vunpack.c.h.b16 %v143
  %v561 = vunpack.c.l.b16 %v144
  %v562 = vunpack.c.h.b16 %v144
  %v563 = vunpack.c.l.b16 %v145
  %v564 = vunpack.c.h.b16 %v145
  %v565 = vunpack.c.l.b16 %v146
  %v566 = vunpack.c.h.b16 %v146
  %v567 = vunpack.c.l.b16 %v147
  %v568 = vunpack.c.h.b16 %v147
  %v569 = vunpack.c.l.b16 %v148
  %v570 = vunpack.c.h.b16 %v148
  %v571 = vunpack.c.l.b16 %v149
  %v572 = vunpack.c.h.b16 %v149
  %v573 = vunpack.c.l.b16 %v150
  %v574 = vunpack.c.h.b16 %v150
  %v575 = vunpack.c.l.b16 %v151
  %v576 = vunpack.c.h.b16 %v151
  %v577 = vunpack.c.l.b16 %v152
  %v578 = vunpack.c.h.b16 %v152
  %v579 = vunpack.c.l.b16 %v153
  %v580 = vunpack.c.h.b16 %v153
  %v581 = vunpack.c.l.b16 %v154
  %v582 = vunpack.c.h.b16 %v154
  %v583 = vunpack.c.l.b16 %v155
  %v584 = vunpack.c.h.b16 %v155
  %v585 = vunpack.c.l.b16 %v156
  %v586 = vunpack.c.h.b16 %v156
  %v587 = vunpack.c.l.b16 %v157
  %v588 = vunpack.c.h.b16 %v157
  %v589 = vunpack.c.l.b16 %v158
  %v590 = vunpack.c.h.b16 %v158
  %v591 = vunpack.c.l.b16 %v159
  %v592 = vunpack.c.h.b16 %v159
  %v593 = vunpack.c.l.b16 %v160
  %v594 = vunpack.c.h.b16 %v160
  %v595 = vunpack.c.l.b16 %v161
  %v596 = vunpack.c.h.b16 %v161
  %v597 = vunpack.c.l.b16 %v162
  %v598 = vunpack.c.h.b16 %v162
  %v599 = vunpack.c.l.b16 %v163
  %v600 = vunpack.c.h.b16 %v163
  %v601 = vunpack.c.l.b16 %v164
  %v602 = vunpack.c.h.b16 %v164
  %v603 = vunpack.c.l.b16 %v165
  %v604 = vunpack.c.h.b16 %v165
  %v605 = vpack.c.b16 %v319, %v317
  %v606 = vpack.c.b16 %v320, %v318
  %v607 = vpack.c.b16 %v323, %v321
  %v608 = vpack.c.b16 %v324, %v322
  %v609 = vpack.c.b16 %v327, %v325
  %v610 = vpack.c.b16 %v328, %v326
  %v611 = vpack.c.b16 %v331, %v329
  %v612 = vpack.c.b16 %v332, %v330
  %v613 = vpack.c.b16 %v335, %v333
  %v614 = vpack.c.b16 %v336, %v334
  %v615 = vpack.c.b16 %v339, %v337
  %v616 = vpack.c.b16 %v340, %v338
  %v617 = vpack.c.b16 %v343, %v341
  %v618 = vpack.c.b16 %v344, %v342
  %v619 = vpack.c.b16 %v347, %v345
  %v620 = vpack.c.b16 %v348, %v346
  %v621 = vpack.c.b16 %v351, %v349
  %v622 = vpack.c.b16 %v352, %v350
  %v623 = vpack.c.b16 %v355, %v353
  %v624 = vpack.c.b16 %v356, %v354
  %v625 = vpack.c.b16 %v359, %v357
  %v626 = vpack.c.b16 %v360, %v358
  %v627 = vpack.c.b16 %v363, %v361
  %v628 = vpack.c.b16 %v364, %v362
  %v629 = vpack.c.b16 %v367, %v365
  %v630 = vpack.c.b16 %v368, %v366
  %v631 = vpack.c.b16 %v371, %v369
  %v632 = vpack.c.b16 %v372, %v370
  %v633 = vpack.c.b16 %v375, %v373
  %v634 = vpack.c.b16 %v376, %v374
  %v635 = vpack.c.b16 %v379, %v377
  %v636 = vpack.c.b16 %v380, %v378
  %v637 = vpack.c.b16 %v383, %v381
  %v638 = vpack.c.b16 %v384, %v382
  %v639 = vpack.c.b16 %v387, %v385
  %v640 = vpack.c.b16 %v388, %v386
  %v641 = vpack.c.b16 %v391, %v389
  %v642 = vpack.c.b16 %v392, %v390
  %v643 = vpack.c.b16 %v395, %v393
  %v644 = vpack.c.b16 %v396, %v394
  %v645 = vpack.c.b16 %v399, %v397
  %v646 = vpack.c.b16 %v400, %v398
  %v647 = vpack.c.b16 %v403, %v401
  %v648 = vpack.c.b16 %v404, %v402
  %v649 = vpack.c.b16 %v407, %v405
  %v650 = vpack.c.b16 %v408, %v406
  %v651 = vpack.c.b16 %v411, %v409
  %v652 = vpack.c.b16 %v412, %v410
  %v653 = vpack.c.b16 %v415, %v413
  %v654 = vpack.c.b16 %v416, %v414
  %v655 = vpack.c.b16 %v419, %v417
  %v656 = vpack.c.b16 %v420, %v418
  %v657 = vpack.c.b16 %v423, %v421
  %v658 = vpack.c.b16 %v424, %v422
  %v659 = vpack.c.b16 %v427, %v425
  %v660 = vpack.c.b16 %v428, %v426
  %v661 = vpack.c.b16 %v431, %v429
  %v662 = vpack.c.b16 %v432, %v430
  %v663 = vpack.c.b16 %v435, %v433
  %v664 = vpack.c.b16 %v436, %v434
  %v665 = vpack.c.b16 %v439, %v437
  %v666 = vpack.c.b16 %v440, %v438
  %v667 = vpack.c.b16 %v443, %v441
  %v668 = vpack.c.b16 %v444, %v442
  %v669 = vpack.c.b16 %v447, %v445
  %v670 = vpack.c.b16 %v448, %v446
  %v671 = vpack.c.b16 %v451, %v449
  %v672 = vpack.c.b16 %v452, %v450
  %v673 = vpack.c.b16 %v455, %v453
  %v674 = vpack.c.b16 %v456, %v454
  %v675 = vpack.c.b16 %v459, %v457
  %v676 = vpack.c.b16 %v460, %v458
  %v677 = vpack.c.b16 %v463, %v461
  %v678 = vpack.c.b16 %v464, %v462
  %v679 = vpack.c.b16 %v467, %v465
  %v680 = vpack.c.b16 %v468, %v466
  %v681 = vpack.c.b16 %v471, %v469
  %v682 = vpack.c.b16 %v472, %v470
  %v683 = vpack.c.b16 %v475, %v473
  %v684 = vpack.c.b16 %v476, %v474
  %v685 = vpack.c.b16 %v479, %v477
  %v686 = vpack.c.b16 %v480, %v478
  %v687 = vpack.c.b16 %v483, %v481
  %v688 = vpack.c.b16 %v484, %v482
  %v689 = vpack.c.b16 %v487, %v485
  %v690 = vpack.c.b16 %v488, %v486
  %v691 = vpack.c.b16 %v491, %v489
  %v692 = vpack.c.b16 %v492, %v490
  %v693 = vpack.c.b16 %v495, %v493
  %v694 = vpack.c.b16 %v496, %v494
  %v695 = vpack.c.b16 %v499, %v497
  %v696 = vpack.c.b16 %v500, %v498
  %v697 = vpack.c.b16 %v503, %v501
  %v698 = vpack.c.b16 %v504, %v502
  %v699 = vpack.c.b16 %v507, %v505
  %v700 = vpack.c.b16 %v508, %v506
  %v701 = vpack.c.b16 %v511, %v509
  %v702 = vpack.c.b16 %v512, %v510
  %v703 = vpack.c.b16 %v515, %v513
  %v704 = vpack.c.b16 %v516, %v514
  %v705 = vpack.c.b16 %v519, %v517
  %v706 = vpack.c.b16 %v520, %v518
  %v707 = vpack.c.b16 %v523, %v521
  %v708 = vpack.c.b16 %v524, %v522
  %v709 = vpack.c.b16 %v527, %v525
  %v710 = vpack.c.b16 %v528, %v526
  %v711 = vpack.c.b16 %v531, %v529
  %v712 = vpack.c.b16 %v532, %v530
  %v713 = vpack.c.b16 %v535, %v533
  %v714 = vpack.c.b16 %v536, %v534
  %v715 = vpack.c.b16 %v539, %v537
  %v716 = vpack.c.b16 %v540, %v538
  %v717 = vpack.c.b16 %v543, %v541
  %v718 = vpack.c.b16 %v544, %v542
  %v719 = vpack.c.b16 %v547, %v545
  %v720 = vpack.c.b16 %v548, %v546
  %v721 = vpack.c.b16 %v551, %v549
  %v722 = vpack.c.b16 %v552, %v550
  %v723 = vpack.c.b16 %v555, %v553
  %v724 = vpack.c.b16 %v556, %v554
  %v725 = vpack.c.b16 %v559, %v557
  %v726 = vpack.c.b16 %v560, %v558
  %v727 = vpack.c.b16 %v563, %v561
  %v728 = vpack.c.b16 %v564, %v562
  %v729 = vpack.c.b16 %v567, %v565
  %v730 = vpack.c.b16 %v568, %v566
  %v731 = vpack.c.b16 %v571, %v569
  %v732 = vpack.c.b16 %v572, %v570
  %v733 = vpack.c.b16 %v575, %v573
  %v734 = vpack.c.b16 %v576, %v574
  %v735 = vpack.c.b16 %v579, %v577
  %v736 = vpack.c.b16 %v580, %v578
  %v737 = vpack.c.b16 %v583, %v581
  %v738 = vpack.c.b16 %v584, %v582
  %v739 = vpack.c.b16 %v587, %v585
  %v740 = vpack.c.b16 %v588, %v586
  %v741 = vpack.c.b16 %v591, %v589
  %v742 = vpack.c.b16 %v592, %v590
  %v743 = vpack.c.b16 %v595, %v593
  %v744 = vpack.c.b16 %v596, %v594
  %v745 = vpack.c.b16 %v599, %v597
  %v746 = vpack.c.b16 %v600, %v598
  %v747 = vpack.c.b16 %v603, %v601
  %v748 = vpack.c.b16 %v604, %v602
  %893 = vmatprep.subr.bf16.mxu0 %v606
  %894 = vmatpush1.bf16.xpose.msra.mxu0 %v605
  %895 = vmatprep.subr.bf16.mxu0 %v608
  %896 = vmatpush1.bf16.xpose.msra.mxu0 %v607
  %897 = vmatprep.subr.bf16.mxu0 %v610
  %898 = vmatpush1.bf16.xpose.msra.mxu0 %v609
  %899 = vmatprep.subr.bf16.mxu0 %v612
  %900 = vmatpush1.bf16.xpose.msra.mxu0 %v611
  %901 = vmatprep.subr.bf16.mxu0 %v614
  %902 = vmatpush1.bf16.xpose.msra.mxu0 %v613
  %903 = vmatprep.subr.bf16.mxu0 %v616
  %904 = vmatpush1.bf16.xpose.msra.mxu0 %v615
  %905 = vmatprep.subr.bf16.mxu0 %v618
  %906 = vmatpush1.bf16.xpose.msra.mxu0 %v617
  %907 = vmatprep.subr.bf16.mxu0 %v620
  %908 = vmatpush1.bf16.xpose.msra.mxu0 %v619
  %909 = vmatprep.subr.bf16.mxu0 %v622
  %910 = vmatpush1.bf16.xpose.msra.mxu0 %v621
  %911 = vmatprep.subr.bf16.mxu0 %v624
  %912 = vmatpush1.bf16.xpose.msra.mxu0 %v623
  %913 = vmatprep.subr.bf16.mxu0 %v626
  %914 = vmatpush1.bf16.xpose.msra.mxu0 %v625
  %915 = vmatprep.subr.bf16.mxu0 %v628
  %916 = vmatpush1.bf16.xpose.msra.mxu0 %v627
  %917 = vmatprep.subr.bf16.mxu0 %v630
  %918 = vmatpush1.bf16.xpose.msra.mxu0 %v629
  %919 = vmatprep.subr.bf16.mxu0 %v632
  %920 = vmatpush1.bf16.xpose.msra.mxu0 %v631
  %921 = vmatprep.subr.bf16.mxu0 %v634
  %922 = vmatpush1.bf16.xpose.msra.mxu0 %v633
  %923 = vmatprep.subr.bf16.mxu0 %v636
  %924 = vmatpush1.bf16.xpose.msra.mxu0 %v635
  %925 = vmatprep.mubr.bf16.mxu0 %v170
  %926 = vmatmul.mubr.bf16.gmra.mrb[0].mxu0 %v169
  %v927 = vpop.f32.mrb[0].mxu0
  %v928 = vadd.f32 0.0, %v927
  %v929 = vpop.f32.mrb[0].mxu0
  %v930 = vadd.f32 0.0, %v929
  %v931 = vpop.f32.mrb[0].mxu0
  %v932 = vpop.f32.mrb[0].mxu0
  %933 = vdwg.mxu0
  %934 = vmatprep.subr.bf16.mxu0 %v638
  %935 = vmatpush1.bf16.xpose.msra.mxu0 %v637
  %936 = vmatprep.subr.bf16.mxu0 %v640
  %937 = vmatpush1.bf16.xpose.msra.mxu0 %v639
  %938 = vmatprep.subr.bf16.mxu0 %v642
  %939 = vmatpush1.bf16.xpose.msra.mxu0 %v641
  %940 = vmatprep.subr.bf16.mxu0 %v644
  %941 = vmatpush1.bf16.xpose.msra.mxu0 %v643
  %942 = vmatprep.subr.bf16.mxu0 %v646
  %943 = vmatpush1.bf16.xpose.msra.mxu0 %v645
  %944 = vmatprep.subr.bf16.mxu0 %v648
  %945 = vmatpush1.bf16.xpose.msra.mxu0 %v647
  %946 = vmatprep.subr.bf16.mxu0 %v650
  %947 = vmatpush1.bf16.xpose.msra.mxu0 %v649
  %948 = vmatprep.subr.bf16.mxu0 %v652
  %949 = vmatpush1.bf16.xpose.msra.mxu0 %v651
  %950 = vmatprep.subr.bf16.mxu0 %v654
  %951 = vmatpush1.bf16.xpose.msra.mxu0 %v653
  %952 = vmatprep.subr.bf16.mxu0 %v656
  %953 = vmatpush1.bf16.xpose.msra.mxu0 %v655
  %954 = vmatprep.subr.bf16.mxu0 %v658
  %955 = vmatpush1.bf16.xpose.msra.mxu0 %v657
  %956 = vmatprep.subr.bf16.mxu0 %v660
  %957 = vmatpush1.bf16.xpose.msra.mxu0 %v659
  %958 = vmatprep.subr.bf16.mxu0 %v662
  %959 = vmatpush1.bf16.xpose.msra.mxu0 %v661
  %960 = vmatprep.subr.bf16.mxu0 %v664
  %961 = vmatpush1.bf16.xpose.msra.mxu0 %v663
  %962 = vmatprep.subr.bf16.mxu0 %v666
  %963 = vmatpush1.bf16.xpose.msra.mxu0 %v665
  %964 = vmatprep.subr.bf16.mxu0 %v668
  %965 = vmatpush1.bf16.xpose.msra.mxu0 %v667
  %966 = vmatprep.mubr.bf16.mxu0 %v170
  %967 = vmatmul.mubr.bf16.gmra.mrb[0].mxu0 %v169
  %v968 = vpop.f32.mrb[0].mxu0
  %v969 = vadd.f32 0.0, %v968
  %v970 = vpop.f32.mrb[0].mxu0
  %v971 = vadd.f32 0.0, %v970
  %v972 = vpop.f32.mrb[0].mxu0
  %v973 = vpop.f32.mrb[0].mxu0
  %974 = vdwg.mxu0
  %975 = vmatprep.subr.bf16.mxu0 %v670
  %976 = vmatpush1.bf16.xpose.msra.mxu0 %v669
  %977 = vmatprep.subr.bf16.mxu0 %v672
  %978 = vmatpush1.bf16.xpose.msra.mxu0 %v671
  %979 = vmatprep.subr.bf16.mxu0 %v674
  %980 = vmatpush1.bf16.xpose.msra.mxu0 %v673
  %981 = vmatprep.subr.bf16.mxu0 %v676
  %982 = vmatpush1.bf16.xpose.msra.mxu0 %v675
  %983 = vmatprep.subr.bf16.mxu0 %v678
  %984 = vmatpush1.bf16.xpose.msra.mxu0 %v677
  %985 = vmatprep.subr.bf16.mxu0 %v680
  %986 = vmatpush1.bf16.xpose.msra.mxu0 %v679
  %987 = vmatprep.subr.bf16.mxu0 %v682
  %988 = vmatpush1.bf16.xpose.msra.mxu0 %v681
  %989 = vmatprep.subr.bf16.mxu0 %v684
  %990 = vmatpush1.bf16.xpose.msra.mxu0 %v683
  %991 = vmatprep.subr.bf16.mxu0 %v686
  %992 = vmatpush1.bf16.xpose.msra.mxu0 %v685
  %993 = vmatprep.subr.bf16.mxu0 %v688
  %994 = vmatpush1.bf16.xpose.msra.mxu0 %v687
  %995 = vmatprep.subr.bf16.mxu0 %v690
  %996 = vmatpush1.bf16.xpose.msra.mxu0 %v689
  %997 = vmatprep.subr.bf16.mxu0 %v692
  %998 = vmatpush1.bf16.xpose.msra.mxu0 %v691
  %999 = vmatprep.subr.bf16.mxu0 %v694
  %1000 = vmatpush1.bf16.xpose.msra.mxu0 %v693
  %1001 = vmatprep.subr.bf16.mxu0 %v696
  %1002 = vmatpush1.bf16.xpose.msra.mxu0 %v695
  %1003 = vmatprep.subr.bf16.mxu0 %v698
  %1004 = vmatpush1.bf16.xpose.msra.mxu0 %v697
  %1005 = vmatprep.subr.bf16.mxu0 %v700
  %1006 = vmatpush1.bf16.xpose.msra.mxu0 %v699
  %1007 = vmatprep.mubr.bf16.mxu0 %v170
  %1008 = vmatmul.mubr.bf16.gmra.mrb[0].mxu0 %v169
  %v1009 = vpop.f32.mrb[0].mxu0
  %v1010 = vadd.f32 0.0, %v1009
  %v1011 = vpop.f32.mrb[0].mxu0
  %v1012 = vadd.f32 0.0, %v1011
  %v1013 = vpop.f32.mrb[0].mxu0
  %v1014 = vpop.f32.mrb[0].mxu0
  %1015 = vdwg.mxu0
  %1016 = vmatprep.subr.bf16.mxu0 %v702
  %1017 = vmatpush1.bf16.xpose.msra.mxu0 %v701
  %1018 = vmatprep.subr.bf16.mxu0 %v704
  %1019 = vmatpush1.bf16.xpose.msra.mxu0 %v703
  %1020 = vmatprep.subr.bf16.mxu0 %v706
  %1021 = vmatpush1.bf16.xpose.msra.mxu0 %v705
  %1022 = vmatprep.subr.bf16.mxu0 %v708
  %1023 = vmatpush1.bf16.xpose.msra.mxu0 %v707
  %1024 = vmatprep.subr.bf16.mxu0 %v710
  %1025 = vmatpush1.bf16.xpose.msra.mxu0 %v709
  %1026 = vmatprep.subr.bf16.mxu0 %v712
  %1027 = vmatpush1.bf16.xpose.msra.mxu0 %v711
  %1028 = vmatprep.subr.bf16.mxu0 %v714
  %1029 = vmatpush1.bf16.xpose.msra.mxu0 %v713
  %1030 = vmatprep.subr.bf16.mxu0 %v716
  %1031 = vmatpush1.bf16.xpose.msra.mxu0 %v715
  %1032 = vmatprep.subr.bf16.mxu0 %v718
  %1033 = vmatpush1.bf16.xpose.msra.mxu0 %v717
  %1034 = vmatprep.subr.bf16.mxu0 %v720
  %1035 = vmatpush1.bf16.xpose.msra.mxu0 %v719
  %1036 = vmatprep.subr.bf16.mxu0 %v722
  %1037 = vmatpush1.bf16.xpose.msra.mxu0 %v721
  %1038 = vmatprep.subr.bf16.mxu0 %v724
  %1039 = vmatpush1.bf16.xpose.msra.mxu0 %v723
  %1040 = vmatprep.subr.bf16.mxu0 %v726
  %1041 = vmatpush1.bf16.xpose.msra.mxu0 %v725
  %1042 = vmatprep.subr.bf16.mxu0 %v728
  %1043 = vmatpush1.bf16.xpose.msra.mxu0 %v727
  %1044 = vmatprep.subr.bf16.mxu0 %v730
  %1045 = vmatpush1.bf16.xpose.msra.mxu0 %v729
  %1046 = vmatprep.subr.bf16.mxu0 %v732
  %1047 = vmatpush1.bf16.xpose.msra.mxu0 %v731
  %1048 = vmatprep.mubr.bf16.mxu0 %v170
  %1049 = vmatmul.mubr.bf16.gmra.mrb[0].mxu0 %v169
  %v1050 = vpop.f32.mrb[0].mxu0
  %v1051 = vadd.f32 0.0, %v1050
  %v1052 = vpop.f32.mrb[0].mxu0
  %v1053 = vadd.f32 0.0, %v1052
  %v1054 = vpop.f32.mrb[0].mxu0
  %v1055 = vpop.f32.mrb[0].mxu0
  %1056 = vdwg.mxu0
  %1057 = vmatprep.subr.bf16.mxu0 %v734
  %1058 = vmatpush1.bf16.xpose.msra.mxu0 %v733
  %1059 = vmatprep.subr.bf16.mxu0 %v736
  %1060 = vmatpush1.bf16.xpose.msra.mxu0 %v735
  %1061 = vmatprep.subr.bf16.mxu0 %v738
  %1062 = vmatpush1.bf16.xpose.msra.mxu0 %v737
  %1063 = vmatprep.subr.bf16.mxu0 %v740
  %1064 = vmatpush1.bf16.xpose.msra.mxu0 %v739
  %1065 = vmatprep.subr.bf16.mxu0 %v742
  %1066 = vmatpush1.bf16.xpose.msra.mxu0 %v741
  %1067 = vmatprep.subr.bf16.mxu0 %v744
  %1068 = vmatpush1.bf16.xpose.msra.mxu0 %v743
  %1069 = vmatprep.subr.bf16.mxu0 %v746
  %1070 = vmatpush1.bf16.xpose.msra.mxu0 %v745
  %1071 = vmatprep.subr.bf16.mxu0 %v748
  %1072 = vmatpush1.bf16.xpose.msra.mxu0 %v747
  %1073 = vmatprep.subr.bf16.mxu0 0
  %1074 = vmatpush1.bf16.xpose.msra.mxu0 0
  %1075 = vmatprep.subr.bf16.mxu0 0
  %1076 = vmatpush1.bf16.xpose.msra.mxu0 0
  %1077 = vmatprep.subr.bf16.mxu0 0
  %1078 = vmatpush1.bf16.xpose.msra.mxu0 0
  %1079 = vmatprep.subr.bf16.mxu0 0
  %1080 = vmatpush1.bf16.xpose.msra.mxu0 0
  %1081 = vmatprep.subr.bf16.mxu0 0
  %1082 = vmatpush1.bf16.xpose.msra.mxu0 0
  %1083 = vmatprep.subr.bf16.mxu0 0
  %1084 = vmatpush1.bf16.xpose.msra.mxu0 0
  %1085 = vmatprep.subr.bf16.mxu0 0
  %1086 = vmatpush1.bf16.xpose.msra.mxu0 0
  %1087 = vmatprep.subr.bf16.mxu0 0
  %1088 = vmatpush1.bf16.xpose.msra.mxu0 0
  %1089 = vmatprep.mubr.bf16.mxu0 %v170
  %1090 = vmatmul.mubr.bf16.gmra.mrb[0].mxu0 %v169
  %v1091 = vpop.f32.mrb[0].mxu0
  %v1092 = vadd.f32 0.0, %v1091
  %v1093 = vpop.f32.mrb[0].mxu0
  %v1094 = vpop.f32.mrb[0].mxu0
  %v1095 = vpop.f32.mrb[0].mxu0
  %1096 = vdwg.mxu0
  %v1097 = vmax.f32 %v928, 0.0
  %v1098 = vmax.f32 %v930, 0.0
  %v1099 = vmax.f32 %v969, 0.0
  %v1100 = vmax.f32 %v971, 0.0
  %v1101 = vmax.f32 %v1010, 0.0
  %v1102 = vmax.f32 %v1012, 0.0
  %v1103 = vmax.f32 %v1051, 0.0
  %v1104 = vmax.f32 %v1053, 0.0
  %v1105 = vmax.f32 %v1092, 0.0
  %v1106 = vmax.f32 %v1097, %v1098
  %v1107 = vmax.f32 %v1106, %v1099
  %v1108 = vmax.f32 %v1107, %v1100
  %v1109 = vmax.f32 %v1108, %v1101
  %v1110 = vmax.f32 %v1109, %v1102
  %v1111 = vmax.f32 %v1110, %v1103
  %v1112 = vmax.f32 %v1111, %v1104
  %v1113 = vmax.f32 %v1112, %v1105
  %v1114 = vld [vmem:[%s2] sm:$0xff]
  %v1115 = vld [vmem:[%s2 + $0x8] sm:$0xff]
  %v1116 = vld [vmem:[%s2 + $0x10] sm:$0xff]
  %v1117 = vld [vmem:[%s2 + $0x18] sm:$0xff]
  %v1118 = vld [vmem:[%s2 + $0x20] sm:$0xff]
  %v1119 = vld [vmem:[%s2 + $0x28] sm:$0xff]
  %v1120 = vld [vmem:[%s2 + $0x30] sm:$0xff]
  %v1121 = vld [vmem:[%s2 + $0x38] sm:$0xff]
  %v1122 = vld [vmem:[%s2 + $0x40] sm:$0xff]
  %v1123 = vld [vmem:[%s2 + $0x48] sm:$0xff]
  %v1124 = vld [vmem:[%s2 + $0x50] sm:$0xff]
  %v1125 = vld [vmem:[%s2 + $0x58] sm:$0xff]
  %v1126 = vld [vmem:[%s2 + $0x60] sm:$0xff]
  %v1127 = vld [vmem:[%s2 + $0x68] sm:$0xff]
  %v1128 = vld [vmem:[%s2 + $0x70] sm:$0xff]
  %v1129 = vld [vmem:[%s2 + $0x78] sm:$0xff]
  %1130 = vmatprep.subr.mxu0 0.0
  %1131 = vmatpush1.msra.mxu0 %v1114
  %1132 = vmatprep.subr.mxu0 0.0
  %1133 = vmatpush1.msra.mxu0 %v1115
  %1134 = vmatprep.subr.mxu0 0.0
  %1135 = vmatpush1.msra.mxu0 %v1116
  %1136 = vmatprep.subr.mxu0 0.0
  %1137 = vmatpush1.msra.mxu0 %v1117
  %1138 = vmatprep.subr.mxu0 0.0
  %1139 = vmatpush1.msra.mxu0 %v1118
  %1140 = vmatprep.subr.mxu0 0.0
  %1141 = vmatpush1.msra.mxu0 %v1119
  %1142 = vmatprep.subr.mxu0 0.0
  %1143 = vmatpush1.msra.mxu0 %v1120
  %1144 = vmatprep.subr.mxu0 0.0
  %1145 = vmatpush1.msra.mxu0 %v1121
  %1146 = vmatprep.subr.mxu0 0.0
  %1147 = vmatpush1.msra.mxu0 %v1122
  %1148 = vmatprep.subr.mxu0 0.0
  %1149 = vmatpush1.msra.mxu0 %v1123
  %1150 = vmatprep.subr.mxu0 0.0
  %1151 = vmatpush1.msra.mxu0 %v1124
  %1152 = vmatprep.subr.mxu0 0.0
  %1153 = vmatpush1.msra.mxu0 %v1125
  %1154 = vmatprep.subr.mxu0 0.0
  %1155 = vmatpush1.msra.mxu0 %v1126
  %1156 = vmatprep.subr.mxu0 0.0
  %1157 = vmatpush1.msra.mxu0 %v1127
  %1158 = vmatprep.subr.mxu0 0.0
  %1159 = vmatpush1.msra.mxu0 %v1128
  %1160 = vmatprep.subr.mxu0 0.0
  %1161 = vmatpush1.msra.mxu0 %v1129
  %1162 = vmatprep.subr.mxu0 0.0
  %1163 = vmatpush1.msra.mxu0 0.0
  %1164 = vmatprep.subr.mxu0 0.0
  %1165 = vmatpush1.msra.mxu0 0.0
  %1166 = vmatprep.subr.mxu0 0.0
  %1167 = vmatpush1.msra.mxu0 0.0
  %1168 = vmatprep.subr.mxu0 0.0
  %1169 = vmatpush1.msra.mxu0 0.0
  %1170 = vmatprep.subr.mxu0 0.0
  %1171 = vmatpush1.msra.mxu0 0.0
  %1172 = vmatprep.subr.mxu0 0.0
  %1173 = vmatpush1.msra.mxu0 0.0
  %1174 = vmatprep.subr.mxu0 0.0
  %1175 = vmatpush1.msra.mxu0 0.0
  %1176 = vmatprep.subr.mxu0 0.0
  %1177 = vmatpush1.msra.mxu0 0.0
  %1178 = vmatprep.subr.mxu0 0.0
  %1179 = vmatpush1.msra.mxu0 0.0
  %1180 = vmatprep.subr.mxu0 0.0
  %1181 = vmatpush1.msra.mxu0 0.0
  %1182 = vmatprep.subr.mxu0 0.0
  %1183 = vmatpush1.msra.mxu0 0.0
  %1184 = vmatprep.subr.mxu0 0.0
  %1185 = vmatpush1.msra.mxu0 0.0
  %1186 = vmatprep.subr.mxu0 0.0
  %1187 = vmatpush1.msra.mxu0 0.0
  %1188 = vmatprep.subr.mxu0 0.0
  %1189 = vmatpush1.msra.mxu0 0.0
  %1190 = vmatprep.subr.mxu0 0.0
  %1191 = vmatpush1.msra.mxu0 0.0
  %1192 = vmatprep.subr.mxu0 0.0
  %1193 = vmatpush1.msra.mxu0 0.0
  %1194 = vmatprep.mubr.f32.mxu0 0.0
  %1195 = vmatmul.mubr.f32.gmra.mrb[0].mxu0 %v1113
  %v1196 = vpop.f32.mrb[0].mxu0
  %v1197 = vadd.f32 0.0, %v1196
  %v1198 = vpop.f32.mrb[0].mxu0
  %1199 = vdwg.mxu0
  %v1200 = vld [vmem:[%s3] sm:$0xff]
  %v1201 = vld [vmem:[%s3 + $0x8] sm:$0x3]
  %v1202 = vld [vmem:[%s4] sm:$0xff]
  %v1203 = vld [vmem:[%s4 + $0x8] sm:$0x3]
  %1205 = vset.pattern.permute.xlu0 0
  %1206 = vperm.xlu0 %1205, %v1202
  %v1207 = vpop.permute.xlu0 %1206
  %1210 = vset.pattern.permute.xlu0 0
  %1211 = vperm.xlu0 %1210, %v1203
  %v1212 = vpop.permute.xlu0 %1211
  %vm1214 = vcmask 64512
  %v1216 = vsel %vm1214, %v1200, 0
  %v1219 = vsel %vm1214, %v1201, 0
  %1221 = vmatprep.subr.mxu0 0.0
  %1222 = vmatpush1.msra.mxu0 %v1197
  %1223 = vmatprep.subr.mxu0 0.0
  %1224 = vmatpush1.msra.mxu0 0.0
  %1225 = vmatprep.subr.mxu0 0.0
  %1226 = vmatpush1.msra.mxu0 0.0
  %1227 = vmatprep.subr.mxu0 0.0
  %1228 = vmatpush1.msra.mxu0 0.0
  %1229 = vmatprep.subr.mxu0 0.0
  %1230 = vmatpush1.msra.mxu0 0.0
  %1231 = vmatprep.subr.mxu0 0.0
  %1232 = vmatpush1.msra.mxu0 0.0
  %1233 = vmatprep.subr.mxu0 0.0
  %1234 = vmatpush1.msra.mxu0 0.0
  %1235 = vmatprep.subr.mxu0 0.0
  %1236 = vmatpush1.msra.mxu0 0.0
  %1237 = vmatprep.subr.mxu0 0.0
  %1238 = vmatpush1.msra.mxu0 0.0
  %1239 = vmatprep.subr.mxu0 0.0
  %1240 = vmatpush1.msra.mxu0 0.0
  %1241 = vmatprep.subr.mxu0 0.0
  %1242 = vmatpush1.msra.mxu0 0.0
  %1243 = vmatprep.subr.mxu0 0.0
  %1244 = vmatpush1.msra.mxu0 0.0
  %1245 = vmatprep.subr.mxu0 0.0
  %1246 = vmatpush1.msra.mxu0 0.0
  %1247 = vmatprep.subr.mxu0 0.0
  %1248 = vmatpush1.msra.mxu0 0.0
  %1249 = vmatprep.subr.mxu0 0.0
  %1250 = vmatpush1.msra.mxu0 0.0
  %1251 = vmatprep.subr.mxu0 0.0
  %1252 = vmatpush1.msra.mxu0 0.0
  %1253 = vmatprep.subr.mxu0 0.0
  %1254 = vmatpush1.msra.mxu0 0.0
  %1255 = vmatprep.subr.mxu0 0.0
  %1256 = vmatpush1.msra.mxu0 0.0
  %1257 = vmatprep.subr.mxu0 0.0
  %1258 = vmatpush1.msra.mxu0 0.0
  %1259 = vmatprep.subr.mxu0 0.0
  %1260 = vmatpush1.msra.mxu0 0.0
  %1261 = vmatprep.subr.mxu0 0.0
  %1262 = vmatpush1.msra.mxu0 0.0
  %1263 = vmatprep.subr.mxu0 0.0
  %1264 = vmatpush1.msra.mxu0 0.0
  %1265 = vmatprep.subr.mxu0 0.0
  %1266 = vmatpush1.msra.mxu0 0.0
  %1267 = vmatprep.subr.mxu0 0.0
  %1268 = vmatpush1.msra.mxu0 0.0
  %1269 = vmatprep.subr.mxu0 0.0
  %1270 = vmatpush1.msra.mxu0 0.0
  %1271 = vmatprep.subr.mxu0 0.0
  %1272 = vmatpush1.msra.mxu0 0.0
  %1273 = vmatprep.subr.mxu0 0.0
  %1274 = vmatpush1.msra.mxu0 0.0
  %1275 = vmatprep.subr.mxu0 0.0
  %1276 = vmatpush1.msra.mxu0 0.0
  %1277 = vmatprep.subr.mxu0 0.0
  %1278 = vmatpush1.msra.mxu0 0.0
  %1279 = vmatprep.subr.mxu0 0.0
  %1280 = vmatpush1.msra.mxu0 0.0
  %1281 = vmatprep.subr.mxu0 0.0
  %1282 = vmatpush1.msra.mxu0 0.0
  %1283 = vmatprep.subr.mxu0 0.0
  %1284 = vmatpush1.msra.mxu0 0.0
  %1285 = vmatprep.mubr.f32.mxu0 0.0
  %1286 = vmatmul.mubr.f32.gmra.mrb[0].mxu0 %v1216
  %v1287 = vpop.f32.mrb[0].mxu0
  %v1288 = vadd.f32 %v1207, %v1287
  %v1289 = vpop.f32.mrb[0].mxu0
  %1290 = vmatprep.mubr.f32.mxu0 0.0
  %1291 = vmatmul.mubr.f32.gmra.mrb[0].mxu0 %v1219
  %v1292 = vpop.f32.mrb[0].mxu0
  %v1293 = vadd.f32 %v1212, %v1292
  %v1294 = vpop.f32.mrb[0].mxu0
  %1295 = vdwg.mxu0
  %vm1296 = vcmask 15360
  %1297 = vst.msk [vmem:[%s5] sm:$0xff] %vm1296, %v1288
  %vm1298 = vcmask 9216
  %1299 = vst.msk [vmem:[%s5 + $0x8] sm:$0x3] %vm1298, %v1293
  // Predicated region
  $region22: #{resnet_forward.1} parent=0 // pred_check
    _
  $region23: #{resnet_forward.1} parent=0 // pred_check_branch
    %1301 = sbr.rel (0) target = $region25
  $region24: #{resnet_forward.1} parent=0 // pred_region
    _
  $region25: #{resnet_forward.1} parent=0 // pred_fallthru
    _
  // Predicated region
  $region26: #{resnet_forward.1} parent=0 // pred_check
    _
  $region27: #{resnet_forward.1} parent=0 // pred_check_branch
    %1303 = sbr.rel (0) target = $region29
  $region28: #{resnet_forward.1} parent=0 // pred_region
    _
  $region29: #{resnet_forward.1} parent=0 // pred_fallthru
    _

</llo_original>
